<compile_context>
chip_gen: v7x
topology: tpu7x:2x2x1
jax: 0.10.0
libtpu: 0.0.40
codegen_flags: <defaults>
</compile_context>

<pallas_src>
import jax
import jax.numpy as jnp
from jax.experimental import pallas as pl
from jax.experimental.pallas import tpu as pltpu

HIDDEN = 256


def _round_up(x, m):
    return (x + m - 1) // m * m


def _pick_tm(B):
    """Batch tile: big enough to amortize ~0.35us/step overhead, >=2 steps when B is
    large (v7x 2-TC sharding), capped at 1024, padding bounded to <16 rows per step."""
    Bp = _round_up(max(B, 16), 16)
    if Bp <= 512:
        return Bp                       # one grid step; whole problem is tiny
    n_steps = max(2, -(-B // 1024))     # ceil(B / 1024), at least 2
    return min(1024, _round_up(-(-B // n_steps), 16))


def _critic_kernel(x_ref, w14_ref, b14_ref, w2_ref, b2_ref,
                   w5_ref, b5_ref, w3r_ref, w6r_ref, b36_ref, q_ref):
    # ---- fused layer 1 (both Q branches): one bf16 MXU pass, f32 accumulate ----
    z = jnp.dot(x_ref[...], w14_ref[...],
                preferred_element_type=jnp.float32) + b14_ref[...]
    # bf16 ReLU / downcast (layer-2 inputs must be bf16 anyway)
    zb = jnp.maximum(z.astype(jnp.bfloat16), 0.0)
    h = zb[:, :HIDDEN]          # Q1 branch
    g = zb[:, HIDDEN:]          # Q2 branch

    # ---- layer 2 per branch (256x256 bf16 MXU, f32 epilogue) ----
    h2 = jnp.maximum(
        jnp.dot(h, w2_ref[...], preferred_element_type=jnp.float32) + b2_ref[...], 0.0)
    g2 = jnp.maximum(
        jnp.dot(g, w5_ref[...], preferred_element_type=jnp.float32) + b5_ref[...], 0.0)

    # ---- heads: N=1 matmuls replaced by VPU multiply + cross-lane reduce ----
    q1 = jnp.sum(h2 * w3r_ref[...], axis=-1, keepdims=True)   # [TM, 1]
    q2 = jnp.sum(g2 * w6r_ref[...], axis=-1, keepdims=True)   # [TM, 1]
    b36 = b36_ref[...]
    q_ref[:, 0:1] = q1 + b36[:, 0:1]
    q_ref[:, 1:2] = q2 + b36[:, 1:2]


def critic_forward(state, action, kparams, *, tm=None):
    """state: [B, state_dim], action: [B, action_dim] -> (q1 [B,1], q2 [B,1])."""
    B = state.shape[0]
    # Wrapper-side concat + bf16 cast: single streamed input, half the DMA bytes.
    x = jnp.concatenate([state.astype(jnp.float32),
                         action.astype(jnp.float32)], axis=1).astype(jnp.bfloat16)
    D = x.shape[1]

    if tm is None:
        tm = _pick_tm(B)
    tm = _round_up(tm, 16)                # bf16 sublane tile
    Bp = _round_up(B, tm)
    if Bp != B:
        x = jnp.pad(x, ((0, Bp - B), (0, 0)))

    (w14, b14, w2, b2, w5, b5, w3r, w6r, b36) = kparams

    batch_spec = lambda shape: pl.BlockSpec(shape, lambda i: (i, 0))
    resident = lambda shape: pl.BlockSpec(shape, lambda i: (0, 0))

    in_specs = [
        batch_spec((tm, D)),                 # x (bf16)
        resident((D, 2 * HIDDEN)),           # w14 (bf16)
        resident((1, 2 * HIDDEN)),           # b14 (f32)
        resident((HIDDEN, HIDDEN)),          # w2 (bf16)
        resident((1, HIDDEN)),               # b2 (f32)
        resident((HIDDEN, HIDDEN)),          # w5 (bf16)
        resident((1, HIDDEN)),               # b5 (f32)
        resident((1, HIDDEN)),               # w3 row (f32)
        resident((1, HIDDEN)),               # w6 row (f32)
        resident((1, 2)),                    # b36 (f32)
    ]
    out_specs = batch_spec((tm, 2))

    flops = 2 * Bp * (D * 2 * HIDDEN + 2 * HIDDEN * HIDDEN)
    bytes_accessed = (Bp * D * 2 + Bp * 2 * 4                       # input + output
                      + D * 2 * HIDDEN * 2 + 2 * HIDDEN * HIDDEN * 2  # bf16 weights
                      + (2 * HIDDEN + 2 * HIDDEN + 2 * HIDDEN + 2) * 4)  # f32 biases/rows

    q = pl.pallas_call(
        _critic_kernel,
        out_shape=jax.ShapeDtypeStruct((Bp, 2), jnp.float32),
        grid=(Bp // tm,),
        in_specs=in_specs,
        out_specs=out_specs,
        compiler_params=pltpu.CompilerParams(
            dimension_semantics=("parallel",)),
        cost_estimate=pl.CostEstimate(flops=flops, transcendentals=0,
                                      bytes_accessed=bytes_accessed),
    )(x, w14, b14, w2, b2, w5, b5, w3r, w6r, b36)

    # Padded rows carry garbage Q-values; slice them off immediately.
    return q[:B, 0:1], q[:B, 1:2]


def init_params(key, state_dim, action_dim):
    """nn.Linear-style init; weights stored as [in, out] (transpose of PyTorch), f32."""
    d = state_dim + action_dim

    def linear(key, fan_in, fan_out):
        kw, kb = jax.random.split(key)
        bound = 1.0 / jnp.sqrt(fan_in)
        w = jax.random.uniform(kw, (fan_in, fan_out), jnp.float32, -bound, bound)
        b = jax.random.uniform(kb, (1, fan_out), jnp.float32, -bound, bound)
        return w, b

    keys = jax.random.split(key, 6)
    w1, b1 = linear(keys[0], d, HIDDEN)
    w2, b2 = linear(keys[1], HIDDEN, HIDDEN)
    w3, b3 = linear(keys[2], HIDDEN, 1)
    w4, b4 = linear(keys[3], d, HIDDEN)
    w5, b5 = linear(keys[4], HIDDEN, HIDDEN)
    w6, b6 = linear(keys[5], HIDDEN, 1)
    return (w1, b1, w2, b2, w3, b3, w4, b4, w5, b5, w6, b6)


def pack_params(params):
    """Repack per-layer params into the fused / bf16 kernel layout."""
    (w1, b1, w2, b2, w3, b3, w4, b4, w5, b5, w6, b6) = params
    w14 = jnp.concatenate([w1, w4], axis=1).astype(jnp.bfloat16)   # [D, 512]
    b14 = jnp.concatenate([b1, b4], axis=1)                        # [1, 512] f32
    w2b = w2.astype(jnp.bfloat16)
    w5b = w5.astype(jnp.bfloat16)
    w3r = w3.T.astype(jnp.float32)                                 # [1, 256]
    w6r = w6.T.astype(jnp.float32)                                 # [1, 256]
    b36 = jnp.concatenate([b3, b6], axis=1)                        # [1, 2]
    return (w14, b14, w2b, b2, w5b, b5, w3r, w6r, b36)


def critic_forward_ref_matched(state, action, kparams):
    """Pure-JAX reference with the SAME mixed-precision recipe as the kernel."""
    (w14, b14, w2, b2, w5, b5, w3r, w6r, b36) = kparams
    x = jnp.concatenate([state, action], axis=1).astype(jnp.bfloat16)
    z = jnp.dot(x, w14, preferred_element_type=jnp.float32) + b14
    zb = jnp.maximum(z.astype(jnp.bfloat16), 0.0)
    h, g = zb[:, :HIDDEN], zb[:, HIDDEN:]
    h2 = jnp.maximum(jnp.dot(h, w2, preferred_element_type=jnp.float32) + b2, 0.0)
    g2 = jnp.maximum(jnp.dot(g, w5, preferred_element_type=jnp.float32) + b5, 0.0)
    q1 = jnp.sum(h2 * w3r, axis=-1, keepdims=True) + b36[:, 0:1]
    q2 = jnp.sum(g2 * w6r, axis=-1, keepdims=True) + b36[:, 1:2]
    return q1, q2


def critic_forward_ref(state, action, params):
    """Pure-f32 reference matching the original PyTorch forward semantics."""
    xa = jnp.concatenate([state, action], axis=1)
    (w1, b1, w2, b2, w3, b3, w4, b4, w5, b5, w6, b6) = params
    h = jax.nn.relu(xa @ w1 + b1)
    h = jax.nn.relu(h @ w2 + b2)
    q1 = h @ w3 + b3
    g = jax.nn.relu(xa @ w4 + b4)
    g = jax.nn.relu(g @ w5 + b5)
    q2 = g @ w6 + b6
    return q1, q2


if __name__ == "__main__":
    key = jax.random.PRNGKey(0)
    k_s, k_a, k_p = jax.random.split(key, 3)

    state_dim = 24
    action_dim = 8
    params = init_params(k_p, state_dim, action_dim)
    kparams = pack_params(params)

    # --- small single-step case ---
    batch = 8
    state = jax.random.normal(k_s, (batch, state_dim), jnp.float32)
    action = jax.random.normal(k_a, (batch, action_dim), jnp.float32)

    q1, q2 = critic_forward(state, action, kparams)
    jax.block_until_ready((q1, q2))
    assert q1.shape == (batch, 1) and q2.shape == (batch, 1)

    q1m, q2m = critic_forward_ref_matched(state, action, kparams)
    assert jnp.allclose(q1, q1m, atol=1e-3, rtol=1e-3)
    assert jnp.allclose(q2, q2m, atol=1e-3, rtol=1e-3)

    q1f, q2f = critic_forward_ref(state, action, params)
    assert jnp.allclose(q1, q1f, atol=1e-1, rtol=1e-1)
    assert jnp.allclose(q2, q2f, atol=1e-1, rtol=1e-1)

    # --- multi-step grid + padded batch case (exercises grid>1 and the [:B] slice) ---
    batch2 = 40
    state2 = jax.random.normal(jax.random.fold_in(k_s, 1), (batch2, state_dim), jnp.float32)
    action2 = jax.random.normal(jax.random.fold_in(k_a, 1), (batch2, action_dim), jnp.float32)
    q1b, q2b = critic_forward(state2, action2, kparams, tm=16)   # grid = 3, 8 pad rows
    jax.block_until_ready((q1b, q2b))
    q1bm, q2bm = critic_forward_ref_matched(state2, action2, kparams)
    assert q1b.shape == (batch2, 1) and q2b.shape == (batch2, 1)
    assert jnp.allclose(q1b, q1bm, atol=1e-3, rtol=1e-3)
    assert jnp.allclose(q2b, q2bm, atol=1e-3, rtol=1e-3)

    print("KERNEL_OK")
</pallas_src>

<mosaic_0001>
module attributes {stable_mosaic.version = 11 : i64} {
  func.func @_critic_kernel(%arg0: i32, %arg1: memref<16x32xbf16, #tpu.memory_space<vmem>>, %arg2: memref<32x512xbf16, #tpu.memory_space<vmem>>, %arg3: memref<1x512xf32, #tpu.memory_space<vmem>>, %arg4: memref<256x256xbf16, #tpu.memory_space<vmem>>, %arg5: memref<1x256xf32, #tpu.memory_space<vmem>>, %arg6: memref<256x256xbf16, #tpu.memory_space<vmem>>, %arg7: memref<1x256xf32, #tpu.memory_space<vmem>>, %arg8: memref<1x256xf32, #tpu.memory_space<vmem>>, %arg9: memref<1x256xf32, #tpu.memory_space<vmem>>, %arg10: memref<1x2xf32, #tpu.memory_space<vmem>>, %arg11: memref<16x2xf32, #tpu.memory_space<vmem>>) attributes {dimension_semantics = [#tpu.dimension_semantics<parallel>], iteration_bounds = array<i64: 1>, scalar_prefetch = 0 : i64, scratch_operands = 0 : i64, tpu.core_type = #tpu.core_type<tc>, window_params = [{transform_indices = @transform_0, window_bounds = array<i64: 16, 32>}, {pipeline_mode = #tpu.pipeline_mode<synchronous>, transform_indices = @transform_1, window_bounds = array<i64: 32, 512>}, {pipeline_mode = #tpu.pipeline_mode<synchronous>, transform_indices = @transform_2, window_bounds = array<i64: 1, 512>}, {pipeline_mode = #tpu.pipeline_mode<synchronous>, transform_indices = @transform_3, window_bounds = array<i64: 256, 256>}, {pipeline_mode = #tpu.pipeline_mode<synchronous>, transform_indices = @transform_4, window_bounds = array<i64: 1, 256>}, {pipeline_mode = #tpu.pipeline_mode<synchronous>, transform_indices = @transform_5, window_bounds = array<i64: 256, 256>}, {pipeline_mode = #tpu.pipeline_mode<synchronous>, transform_indices = @transform_6, window_bounds = array<i64: 1, 256>}, {pipeline_mode = #tpu.pipeline_mode<synchronous>, transform_indices = @transform_7, window_bounds = array<i64: 1, 256>}, {pipeline_mode = #tpu.pipeline_mode<synchronous>, transform_indices = @transform_8, window_bounds = array<i64: 1, 256>}, {pipeline_mode = #tpu.pipeline_mode<synchronous>, transform_indices = @transform_9, window_bounds = array<i64: 1, 2>}, {transform_indices = @transform_10, window_bounds = array<i64: 16, 2>}]} {
    %c0 = arith.constant 0 : index
    %c0_0 = arith.constant 0 : index
    %0 = vector.load %arg1[%c0, %c0_0] : memref<16x32xbf16, #tpu.memory_space<vmem>>, vector<16x32xbf16>
    %c0_1 = arith.constant 0 : index
    %c0_2 = arith.constant 0 : index
    %1 = vector.load %arg2[%c0_1, %c0_2] : memref<32x512xbf16, #tpu.memory_space<vmem>>, vector<32x512xbf16>
    %cst = arith.constant dense<0.000000e+00> : vector<16x512xf32>
    %2 = tpu.matmul %0, %1, %cst {dimension_numbers = #tpu.dot_dimension_numbers<[1], [0], [0], [1], [0, 0, 1, 1], [], []>} : vector<16x32xbf16>, vector<32x512xbf16>, vector<16x512xf32> -> vector<16x512xf32>
    %c0_3 = arith.constant 0 : index
    %c0_4 = arith.constant 0 : index
    %3 = vector.load %arg3[%c0_3, %c0_4] : memref<1x512xf32, #tpu.memory_space<vmem>>, vector<1x512xf32>
    %4 = vector.broadcast %3 : vector<1x512xf32> to vector<16x512xf32>
    %5 = arith.addf %2, %4 : vector<16x512xf32>
    %6 = arith.truncf %5 : vector<16x512xf32> to vector<16x512xbf16>
    %cst_5 = arith.constant 0.000000e+00 : bf16
    %7 = vector.broadcast %cst_5 : bf16 to vector<16x512xbf16>
    %8 = arith.maximumf %6, %7 : vector<16x512xbf16>
    %9 = vector.extract_strided_slice %8 {offsets = [0, 0], sizes = [16, 256], strides = [1, 1]} : vector<16x512xbf16> to vector<16x256xbf16>
    %10 = vector.extract_strided_slice %8 {offsets = [0, 256], sizes = [16, 256], strides = [1, 1]} : vector<16x512xbf16> to vector<16x256xbf16>
    %c0_6 = arith.constant 0 : index
    %c0_7 = arith.constant 0 : index
    %11 = vector.load %arg4[%c0_6, %c0_7] : memref<256x256xbf16, #tpu.memory_space<vmem>>, vector<256x256xbf16>
    %cst_8 = arith.constant dense<0.000000e+00> : vector<16x256xf32>
    %12 = tpu.matmul %9, %11, %cst_8 {dimension_numbers = #tpu.dot_dimension_numbers<[1], [0], [0], [1], [0, 0, 1, 1], [], []>} : vector<16x256xbf16>, vector<256x256xbf16>, vector<16x256xf32> -> vector<16x256xf32>
    %c0_9 = arith.constant 0 : index
    %c0_10 = arith.constant 0 : index
    %13 = vector.load %arg5[%c0_9, %c0_10] : memref<1x256xf32, #tpu.memory_space<vmem>>, vector<1x256xf32>
    %14 = vector.broadcast %13 : vector<1x256xf32> to vector<16x256xf32>
    %15 = arith.addf %12, %14 : vector<16x256xf32>
    %cst_11 = arith.constant 0.000000e+00 : f32
    %16 = vector.broadcast %cst_11 : f32 to vector<16x256xf32>
    %17 = arith.maximumf %15, %16 : vector<16x256xf32>
    %c0_12 = arith.constant 0 : index
    %c0_13 = arith.constant 0 : index
    %18 = vector.load %arg6[%c0_12, %c0_13] : memref<256x256xbf16, #tpu.memory_space<vmem>>, vector<256x256xbf16>
    %cst_14 = arith.constant dense<0.000000e+00> : vector<16x256xf32>
    %19 = tpu.matmul %10, %18, %cst_14 {dimension_numbers = #tpu.dot_dimension_numbers<[1], [0], [0], [1], [0, 0, 1, 1], [], []>} : vector<16x256xbf16>, vector<256x256xbf16>, vector<16x256xf32> -> vector<16x256xf32>
    %c0_15 = arith.constant 0 : index
    %c0_16 = arith.constant 0 : index
    %20 = vector.load %arg7[%c0_15, %c0_16] : memref<1x256xf32, #tpu.memory_space<vmem>>, vector<1x256xf32>
    %21 = vector.broadcast %20 : vector<1x256xf32> to vector<16x256xf32>
    %22 = arith.addf %19, %21 : vector<16x256xf32>
    %cst_17 = arith.constant 0.000000e+00 : f32
    %23 = vector.broadcast %cst_17 : f32 to vector<16x256xf32>
    %24 = arith.maximumf %22, %23 : vector<16x256xf32>
    %c0_18 = arith.constant 0 : index
    %c0_19 = arith.constant 0 : index
    %25 = vector.load %arg8[%c0_18, %c0_19] : memref<1x256xf32, #tpu.memory_space<vmem>>, vector<1x256xf32>
    %26 = vector.broadcast %25 : vector<1x256xf32> to vector<16x256xf32>
    %27 = arith.mulf %17, %26 : vector<16x256xf32>
    %cst_20 = arith.constant dense<0.000000e+00> : vector<16xf32>
    %28 = vector.multi_reduction <add>, %27, %cst_20 [1] : vector<16x256xf32> to vector<16xf32>
    %29 = vector.shape_cast %28 : vector<16xf32> to vector<16x1xf32>
    %c0_21 = arith.constant 0 : index
    %c0_22 = arith.constant 0 : index
    %30 = vector.load %arg9[%c0_21, %c0_22] : memref<1x256xf32, #tpu.memory_space<vmem>>, vector<1x256xf32>
    %31 = vector.broadcast %30 : vector<1x256xf32> to vector<16x256xf32>
    %32 = arith.mulf %24, %31 : vector<16x256xf32>
    %cst_23 = arith.constant dense<0.000000e+00> : vector<16xf32>
    %33 = vector.multi_reduction <add>, %32, %cst_23 [1] : vector<16x256xf32> to vector<16xf32>
    %34 = vector.shape_cast %33 : vector<16xf32> to vector<16x1xf32>
    %c0_24 = arith.constant 0 : index
    %c0_25 = arith.constant 0 : index
    %35 = vector.load %arg10[%c0_24, %c0_25] : memref<1x2xf32, #tpu.memory_space<vmem>>, vector<1x2xf32>
    %36 = vector.extract_strided_slice %35 {offsets = [0, 0], sizes = [1, 1], strides = [1, 1]} : vector<1x2xf32> to vector<1x1xf32>
    %37 = vector.broadcast %36 : vector<1x1xf32> to vector<16x1xf32>
    %38 = arith.addf %29, %37 : vector<16x1xf32>
    %c0_26 = arith.constant 0 : index
    %c0_27 = arith.constant 0 : index
    %39 = vector.load %arg11[%c0_26, %c0_27] : memref<16x2xf32, #tpu.memory_space<vmem>>, vector<16x1xf32>
    tpu.vector_store %arg11[%c0_26, %c0_27], %38 {strides = array<i32>} : memref<16x2xf32, #tpu.memory_space<vmem>>, vector<16x1xf32>,
    %40 = vector.extract_strided_slice %35 {offsets = [0, 1], sizes = [1, 1], strides = [1, 1]} : vector<1x2xf32> to vector<1x1xf32>
    %41 = vector.broadcast %40 : vector<1x1xf32> to vector<16x1xf32>
    %42 = arith.addf %34, %41 : vector<16x1xf32>
    %c0_28 = arith.constant 0 : index
    %c1 = arith.constant 1 : index
    %43 = vector.load %arg11[%c0_28, %c1] : memref<16x2xf32, #tpu.memory_space<vmem>>, vector<16x1xf32>
    tpu.vector_store %arg11[%c0_28, %c1], %42 {strides = array<i32>} : memref<16x2xf32, #tpu.memory_space<vmem>>, vector<16x1xf32>,
    return
  }
  func.func @transform_0(%arg0: i32) -> (i32, i32) {
    %c0_i32 = arith.constant 0 : i32
    %c0_i32_0 = arith.constant 0 : i32
    return %arg0, %c0_i32 : i32, i32
  }
  func.func @transform_1(%arg0: i32) -> (i32, i32) {
    %c0_i32 = arith.constant 0 : i32
    %c0_i32_0 = arith.constant 0 : i32
    %c0_i32_1 = arith.constant 0 : i32
    return %c0_i32, %c0_i32_0 : i32, i32
  }
  func.func @transform_2(%arg0: i32) -> (i32, i32) {
    %c0_i32 = arith.constant 0 : i32
    %c0_i32_0 = arith.constant 0 : i32
    %c0_i32_1 = arith.constant 0 : i32
    return %c0_i32, %c0_i32_0 : i32, i32
  }
  func.func @transform_3(%arg0: i32) -> (i32, i32) {
    %c0_i32 = arith.constant 0 : i32
    %c0_i32_0 = arith.constant 0 : i32
    %c0_i32_1 = arith.constant 0 : i32
    return %c0_i32, %c0_i32_0 : i32, i32
  }
  func.func @transform_4(%arg0: i32) -> (i32, i32) {
    %c0_i32 = arith.constant 0 : i32
    %c0_i32_0 = arith.constant 0 : i32
    %c0_i32_1 = arith.constant 0 : i32
    return %c0_i32, %c0_i32_0 : i32, i32
  }
  func.func @transform_5(%arg0: i32) -> (i32, i32) {
    %c0_i32 = arith.constant 0 : i32
    %c0_i32_0 = arith.constant 0 : i32
    %c0_i32_1 = arith.constant 0 : i32
    return %c0_i32, %c0_i32_0 : i32, i32
  }
  func.func @transform_6(%arg0: i32) -> (i32, i32) {
    %c0_i32 = arith.constant 0 : i32
    %c0_i32_0 = arith.constant 0 : i32
    %c0_i32_1 = arith.constant 0 : i32
    return %c0_i32, %c0_i32_0 : i32, i32
  }
  func.func @transform_7(%arg0: i32) -> (i32, i32) {
    %c0_i32 = arith.constant 0 : i32
    %c0_i32_0 = arith.constant 0 : i32
    %c0_i32_1 = arith.constant 0 : i32
    return %c0_i32, %c0_i32_0 : i32, i32
  }
  func.func @transform_8(%arg0: i32) -> (i32, i32) {
    %c0_i32 = arith.constant 0 : i32
    %c0_i32_0 = arith.constant 0 : i32
    %c0_i32_1 = arith.constant 0 : i32
    return %c0_i32, %c0_i32_0 : i32, i32
  }
  func.func @transform_9(%arg0: i32) -> (i32, i32) {
    %c0_i32 = arith.constant 0 : i32
    %c0_i32_0 = arith.constant 0 : i32
    %c0_i32_1 = arith.constant 0 : i32
    return %c0_i32, %c0_i32_0 : i32, i32
  }
  func.func @transform_10(%arg0: i32) -> (i32, i32) {
    %c0_i32 = arith.constant 0 : i32
    %c0_i32_0 = arith.constant 0 : i32
    return %arg0, %c0_i32 : i32, i32
  }
}

</mosaic_0001>

<llo_original>
// kernel: tpu_custom_call.1
$region0: #{tpu_custom_call.1}
  #allocation0 [shape = 'u32[]', space=smem, size = 0x4, offset = 0x4, fixed_abs, tag = 'smem constant byte address 0x4 - core index']
  #allocation1 [shape = 'u32[144,128]{1,0:T(1,128)}', space=vmem, size = 0x12000, scoped, tag = 'internal scratch']
  %s0 = inlined_call_operand.hbm [shape: bf16[16,32], index: 0, kind: input, shape index: {}]
  %s1 = inlined_call_operand.hbm [shape: bf16[32,512], index: 1, kind: input, shape index: {}]
  %s2 = inlined_call_operand.vmem [shape: f32[1,512], index: 2, kind: input, shape index: {}]
  %s3 = inlined_call_operand.hbm [shape: bf16[256,256], index: 3, kind: input, shape index: {}]
  %s4 = inlined_call_operand.vmem [shape: f32[1,256], index: 4, kind: input, shape index: {}]
  %s5 = inlined_call_operand.hbm [shape: bf16[256,256], index: 5, kind: input, shape index: {}]
  %s6 = inlined_call_operand.vmem [shape: f32[1,256], index: 6, kind: input, shape index: {}]
  %s7 = inlined_call_operand.vmem [shape: f32[1,256], index: 7, kind: input, shape index: {}]
  %s8 = inlined_call_operand.vmem [shape: f32[1,256], index: 8, kind: input, shape index: {}]
  %s9 = inlined_call_operand.vmem [shape: f32[1,2], index: 9, kind: input, shape index: {}]
  %s10 = inlined_call_operand.vmem [shape: f32[16,2], index: 10, kind: output, shape index: {}]
  %s11 = sld [smem:[#allocation0]]
  $region66: #{tpu_custom_call.1} parent=0
    _
  %s13 = ssub.s32 1, %s11
  %s14 = scalar_select 0, %s13, %s11
  $region1: #{tpu_custom_call.1} parent=0
    #allocation2 [shape = 'u8[4096]{0}', space=vmem, size = 0x1000, scoped, tag = 'input window, operand 0, single buffered']
    #allocation3 [shape = 's32[1]{0}', space=sflag, size = 0x4, scoped, tag = 'scoped memory for tpu_custom_call.1']
    #allocation4 [shape = 'u8[32768]{0}', space=vmem, size = 0x8000, scoped, tag = 'input window, operand 1, single buffered']
    #allocation5 [shape = 's32[1]{0}', space=sflag, size = 0x4, scoped, tag = 'scoped memory for tpu_custom_call.1']
    #allocation6 [shape = 'u8[131072]{0}', space=vmem, size = 0x20000, scoped, tag = 'input window, operand 3, single buffered']
    #allocation7 [shape = 'u8[131072]{0}', space=vmem, size = 0x20000, scoped, tag = 'input window, operand 5, single buffered']
    #allocation8 [shape = 's32[1]{0}', space=sflag, size = 0x4, scoped, tag = 'scoped memory for tpu_custom_call.1']
    %15 = vsyncpa [#allocation3], 0
    %16 = vsyncpa [#allocation5], 0
    %17 = vsyncpa [#allocation8], 0
    // Predicated region
    $region2: #{tpu_custom_call.1} parent=1 // pred_check
      _
    $region3: #{tpu_custom_call.1} parent=1 // pred_check_branch
      %19 = sbr.rel (0) target = $region5
    $region4: #{tpu_custom_call.1} parent=1 // pred_region
      %s21 = ssub.s32 128, 128
      %22 = vsyncadd [#allocation3], %s21
      %s23 = sshll.u32 [#allocation2], 4
      %s24 = int_to_ptr.vmem [resolvable:$true] %s23
      %29 = dma.hbm_to_vmem [thread:$0]  %s0, 128, %s24, [#allocation3], 64, 64, 4
    $region5: #{tpu_custom_call.1} parent=1 // pred_fallthru
      _
    // Predicated region
    $region6: #{tpu_custom_call.1} parent=1 // pred_check
      _
    $region7: #{tpu_custom_call.1} parent=1 // pred_check_branch
      %31 = sbr.rel (0) target = $region9
    $region8: #{tpu_custom_call.1} parent=1 // pred_region
      %s33 = ssub.s32 1024, 1024
      %34 = vsyncadd [#allocation5], %s33
      %s35 = sshll.u32 [#allocation4], 4
      %s36 = int_to_ptr.vmem [resolvable:$true] %s35
      %41 = dma.hbm_to_vmem [thread:$0]  %s1, 1024, %s36, [#allocation5], 256, 256, 16
    $region9: #{tpu_custom_call.1} parent=1 // pred_fallthru
      _
    // Predicated region
    $region10: #{tpu_custom_call.1} parent=1 // pred_check
      _
    $region11: #{tpu_custom_call.1} parent=1 // pred_check_branch
      %43 = sbr.rel (0) target = $region13
    $region12: #{tpu_custom_call.1} parent=1 // pred_region
      _
    $region13: #{tpu_custom_call.1} parent=1 // pred_fallthru
      _
    // Predicated region
    $region14: #{tpu_custom_call.1} parent=1 // pred_check
      _
    $region15: #{tpu_custom_call.1} parent=1 // pred_check_branch
      %45 = sbr.rel (0) target = $region17
    $region16: #{tpu_custom_call.1} parent=1 // pred_region
      %s47 = ssub.s32 4096, 4096
      %48 = vsyncadd [#allocation5], %s47
      %s49 = sshll.u32 [#allocation6], 4
      %s50 = int_to_ptr.vmem [resolvable:$true] %s49
      %55 = dma.hbm_to_vmem [thread:$0]  %s3, 4096, %s50, [#allocation5], 128, 128, 8
    $region17: #{tpu_custom_call.1} parent=1 // pred_fallthru
      _
    // Predicated region
    $region18: #{tpu_custom_call.1} parent=1 // pred_check
      _
    $region19: #{tpu_custom_call.1} parent=1 // pred_check_branch
      %57 = sbr.rel (0) target = $region21
    $region20: #{tpu_custom_call.1} parent=1 // pred_region
      _
    $region21: #{tpu_custom_call.1} parent=1 // pred_fallthru
      _
    // Predicated region
    $region22: #{tpu_custom_call.1} parent=1 // pred_check
      _
    $region23: #{tpu_custom_call.1} parent=1 // pred_check_branch
      %59 = sbr.rel (0) target = $region25
    $region24: #{tpu_custom_call.1} parent=1 // pred_region
      %s61 = ssub.s32 4096, 4096
      %62 = vsyncadd [#allocation8], %s61
      %s63 = sshll.u32 [#allocation7], 4
      %s64 = int_to_ptr.vmem [resolvable:$true] %s63
      %69 = dma.hbm_to_vmem [thread:$0]  %s5, 4096, %s64, [#allocation8], 128, 128, 8
    $region25: #{tpu_custom_call.1} parent=1 // pred_fallthru
      _
    // Predicated region
    $region26: #{tpu_custom_call.1} parent=1 // pred_check
      _
    $region27: #{tpu_custom_call.1} parent=1 // pred_check_branch
      %71 = sbr.rel (0) target = $region29
    $region28: #{tpu_custom_call.1} parent=1 // pred_region
      _
    $region29: #{tpu_custom_call.1} parent=1 // pred_fallthru
      _
    // Predicated region
    $region30: #{tpu_custom_call.1} parent=1 // pred_check
      _
    $region31: #{tpu_custom_call.1} parent=1 // pred_check_branch
      %73 = sbr.rel (0) target = $region33
    $region32: #{tpu_custom_call.1} parent=1 // pred_region
      _
    $region33: #{tpu_custom_call.1} parent=1 // pred_fallthru
      _
    // Predicated region
    $region34: #{tpu_custom_call.1} parent=1 // pred_check
      _
    $region35: #{tpu_custom_call.1} parent=1 // pred_check_branch
      %75 = sbr.rel (0) target = $region37
    $region36: #{tpu_custom_call.1} parent=1 // pred_region
      _
    $region37: #{tpu_custom_call.1} parent=1 // pred_fallthru
      _
    // Predicated region
    $region38: #{tpu_custom_call.1} parent=1 // pred_check
      _
    $region39: #{tpu_custom_call.1} parent=1 // pred_check_branch
      %77 = sbr.rel (0) target = $region41
    $region40: #{tpu_custom_call.1} parent=1 // pred_region
      _
    $region41: #{tpu_custom_call.1} parent=1 // pred_fallthru
      _
    // Predicated region
    $region42: #{tpu_custom_call.1} parent=1 // pred_check
      _
    $region43: #{tpu_custom_call.1} parent=1 // pred_check_branch
      %79 = sbr.rel (0) target = $region45
    $region44: #{tpu_custom_call.1} parent=1 // pred_region
      %80 = dma.done [#allocation3], 128
    $region45: #{tpu_custom_call.1} parent=1 // pred_fallthru
      _
    // Predicated region
    $region46: #{tpu_custom_call.1} parent=1 // pred_check
      _
    $region47: #{tpu_custom_call.1} parent=1 // pred_check_branch
      %82 = sbr.rel (0) target = $region49
    $region48: #{tpu_custom_call.1} parent=1 // pred_region
      %83 = dma.done [#allocation5], 1024
    $region49: #{tpu_custom_call.1} parent=1 // pred_fallthru
      _
    // Predicated region
    $region50: #{tpu_custom_call.1} parent=1 // pred_check
      _
    $region51: #{tpu_custom_call.1} parent=1 // pred_check_branch
      %85 = sbr.rel (0) target = $region53
    $region52: #{tpu_custom_call.1} parent=1 // pred_region
      %86 = dma.done [#allocation5], 4096
    $region53: #{tpu_custom_call.1} parent=1 // pred_fallthru
      _
    // Predicated region
    $region54: #{tpu_custom_call.1} parent=1 // pred_check
      _
    $region55: #{tpu_custom_call.1} parent=1 // pred_check_branch
      %88 = sbr.rel (0) target = $region57
    $region56: #{tpu_custom_call.1} parent=1 // pred_region
      %89 = dma.done [#allocation8], 4096
    $region57: #{tpu_custom_call.1} parent=1 // pred_fallthru
      _
    %v91 = vld [vmem:[#allocation2] sm:$0xf]
    %v92 = vld [vmem:[#allocation2 + $0x4] sm:$0xf]
    %v93 = vld [vmem:[#allocation4] sm:$0xff]
    %v94 = vld [vmem:[#allocation4 + $0x8] sm:$0xff]
    %v95 = vld [vmem:[#allocation4 + $0x10] sm:$0xff]
    %v96 = vld [vmem:[#allocation4 + $0x18] sm:$0xff]
    %v97 = vld [vmem:[#allocation4 + $0x20] sm:$0xff]
    %v98 = vld [vmem:[#allocation4 + $0x28] sm:$0xff]
    %v99 = vld [vmem:[#allocation4 + $0x30] sm:$0xff]
    %v100 = vld [vmem:[#allocation4 + $0x38] sm:$0xff]
    %v101 = vld [vmem:[%s2] sm:$0xf]
    %v103 = vlaneseq
    %v104 = vshrl.u32 %v103, 7
    %v105 = vsub.s32 0, %v104
    %v106 = vrot.slane %v101, %v105
    %v107 = vlaneseq
    %v108 = vshrl.u32 %v107, 7
    %v109 = vsub.s32 1, %v108
    %v110 = vrot.slane %v101, %v109
    %v111 = vlaneseq
    %v112 = vshrl.u32 %v111, 7
    %v113 = vsub.s32 2, %v112
    %v114 = vrot.slane %v101, %v113
    %v115 = vlaneseq
    %v116 = vshrl.u32 %v115, 7
    %v117 = vsub.s32 3, %v116
    %v118 = vrot.slane %v101, %v117
    %v125 = vunpack.c.l.b16 %v91
    %v126 = vunpack.c.l.b16 %v92
    %v127 = vpack.c.b16 %v126, %v125
    %v136 = vunpack.c.l.b16 %v93
    %v137 = vunpack.c.h.b16 %v93
    %v138 = vunpack.c.l.b16 %v94
    %v139 = vunpack.c.h.b16 %v94
    %v140 = vunpack.c.l.b16 %v95
    %v141 = vunpack.c.h.b16 %v95
    %v142 = vunpack.c.l.b16 %v96
    %v143 = vunpack.c.h.b16 %v96
    %v144 = vunpack.c.l.b16 %v97
    %v145 = vunpack.c.h.b16 %v97
    %v146 = vunpack.c.l.b16 %v98
    %v147 = vunpack.c.h.b16 %v98
    %v148 = vunpack.c.l.b16 %v99
    %v149 = vunpack.c.h.b16 %v99
    %v150 = vunpack.c.l.b16 %v100
    %v151 = vunpack.c.h.b16 %v100
    %v152 = vpack.c.b16 %v140, %v136
    %v153 = vpack.c.b16 %v141, %v137
    %v154 = vpack.c.b16 %v142, %v138
    %v155 = vpack.c.b16 %v143, %v139
    %v156 = vpack.c.b16 %v148, %v144
    %v157 = vpack.c.b16 %v149, %v145
    %v158 = vpack.c.b16 %v150, %v146
    %v159 = vpack.c.b16 %v151, %v147
    %vm168 = vcmask 261120
    %v170 = vsel %vm168, %v127, 0
    %172 = vmatprep.subr.bf16.mxu0 %v153
    %173 = vmatpush1.bf16.msra.mxu0 %v152
    %174 = vmatprep.subr.bf16.mxu0 %v157
    %175 = vmatpush1.bf16.msra.mxu0 %v156
    %176 = vmatprep.subr.bf16.mxu0 0
    %177 = vmatpush1.bf16.msra.mxu0 0
    %178 = vmatprep.subr.bf16.mxu0 0
    %179 = vmatpush1.bf16.msra.mxu0 0
    %180 = vmatprep.subr.bf16.mxu0 0
    %181 = vmatpush1.bf16.msra.mxu0 0
    %182 = vmatprep.subr.bf16.mxu0 0
    %183 = vmatpush1.bf16.msra.mxu0 0
    %184 = vmatprep.subr.bf16.mxu0 0
    %185 = vmatpush1.bf16.msra.mxu0 0
    %186 = vmatprep.subr.bf16.mxu0 0
    %187 = vmatpush1.bf16.msra.mxu0 0
    %188 = vmatprep.subr.bf16.mxu0 0
    %189 = vmatpush1.bf16.msra.mxu0 0
    %190 = vmatprep.subr.bf16.mxu0 0
    %191 = vmatpush1.bf16.msra.mxu0 0
    %192 = vmatprep.subr.bf16.mxu0 0
    %193 = vmatpush1.bf16.msra.mxu0 0
    %194 = vmatprep.subr.bf16.mxu0 0
    %195 = vmatpush1.bf16.msra.mxu0 0
    %196 = vmatprep.subr.bf16.mxu0 0
    %197 = vmatpush1.bf16.msra.mxu0 0
    %198 = vmatprep.subr.bf16.mxu0 0
    %199 = vmatpush1.bf16.msra.mxu0 0
    %200 = vmatprep.subr.bf16.mxu0 0
    %201 = vmatpush1.bf16.msra.mxu0 0
    %202 = vmatprep.subr.bf16.mxu0 0
    %203 = vmatpush1.bf16.msra.mxu0 0
    %204 = vmatprep.mubr.bf16.mxu0 0
    %205 = vmatmul.mubr.bf16.gmra.mrb[0].mxu0 %v170
    %v206 = vpop.f32.mrb[0].mxu0
    %v207 = vadd.f32 %v106, %v206
    %v208 = vpop.f32.mrb[0].mxu0
    %v209 = vadd.f32 %v110, %v208
    %v210 = vpop.f32.mrb[0].mxu0
    %v211 = vadd.f32 %v106, %v210
    %v212 = vpop.f32.mrb[0].mxu0
    %v213 = vadd.f32 %v110, %v212
    %214 = vdwg.mxu0
    %215 = vmatprep.subr.bf16.mxu0 %v155
    %216 = vmatpush1.bf16.msra.mxu0 %v154
    %217 = vmatprep.subr.bf16.mxu0 %v159
    %218 = vmatpush1.bf16.msra.mxu0 %v158
    %219 = vmatprep.subr.bf16.mxu0 0
    %220 = vmatpush1.bf16.msra.mxu0 0
    %221 = vmatprep.subr.bf16.mxu0 0
    %222 = vmatpush1.bf16.msra.mxu0 0
    %223 = vmatprep.subr.bf16.mxu0 0
    %224 = vmatpush1.bf16.msra.mxu0 0
    %225 = vmatprep.subr.bf16.mxu0 0
    %226 = vmatpush1.bf16.msra.mxu0 0
    %227 = vmatprep.subr.bf16.mxu0 0
    %228 = vmatpush1.bf16.msra.mxu0 0
    %229 = vmatprep.subr.bf16.mxu0 0
    %230 = vmatpush1.bf16.msra.mxu0 0
    %231 = vmatprep.subr.bf16.mxu0 0
    %232 = vmatpush1.bf16.msra.mxu0 0
    %233 = vmatprep.subr.bf16.mxu0 0
    %234 = vmatpush1.bf16.msra.mxu0 0
    %235 = vmatprep.subr.bf16.mxu0 0
    %236 = vmatpush1.bf16.msra.mxu0 0
    %237 = vmatprep.subr.bf16.mxu0 0
    %238 = vmatpush1.bf16.msra.mxu0 0
    %239 = vmatprep.subr.bf16.mxu0 0
    %240 = vmatpush1.bf16.msra.mxu0 0
    %241 = vmatprep.subr.bf16.mxu0 0
    %242 = vmatpush1.bf16.msra.mxu0 0
    %243 = vmatprep.subr.bf16.mxu0 0
    %244 = vmatpush1.bf16.msra.mxu0 0
    %245 = vmatprep.subr.bf16.mxu0 0
    %246 = vmatpush1.bf16.msra.mxu0 0
    %247 = vmatprep.mubr.bf16.mxu0 0
    %248 = vmatmul.mubr.bf16.gmra.mrb[0].mxu0 %v170
    %v249 = vpop.f32.mrb[0].mxu0
    %v250 = vadd.f32 %v114, %v249
    %v251 = vpop.f32.mrb[0].mxu0
    %v252 = vadd.f32 %v118, %v251
    %v253 = vpop.f32.mrb[0].mxu0
    %v254 = vadd.f32 %v114, %v253
    %v255 = vpop.f32.mrb[0].mxu0
    %v256 = vadd.f32 %v118, %v255
    %257 = vdwg.mxu0
    %v258 = vpack.c.bf16 %v211, %v207
    %v259 = vpack.c.bf16 %v213, %v209
    %v260 = vpack.c.bf16 %v254, %v250
    %v261 = vpack.c.bf16 %v256, %v252
    %v262 = vmax.bf16 %v258, 0
    %v263 = vmax.bf16 %v259, 0
    %v264 = vmax.bf16 %v260, 0
    %v265 = vmax.bf16 %v261, 0
    %v266 = vld [vmem:[#allocation6] sm:$0xff]
    %v267 = vld [vmem:[#allocation6 + $0x8] sm:$0xff]
    %v268 = vld [vmem:[#allocation6 + $0x10] sm:$0xff]
    %v269 = vld [vmem:[#allocation6 + $0x18] sm:$0xff]
    %v270 = vld [vmem:[#allocation6 + $0x20] sm:$0xff]
    %v271 = vld [vmem:[#allocation6 + $0x28] sm:$0xff]
    %v272 = vld [vmem:[#allocation6 + $0x30] sm:$0xff]
    %v273 = vld [vmem:[#allocation6 + $0x38] sm:$0xff]
    %v274 = vld [vmem:[#allocation6 + $0x40] sm:$0xff]
    %v275 = vld [vmem:[#allocation6 + $0x48] sm:$0xff]
    %v276 = vld [vmem:[#allocation6 + $0x50] sm:$0xff]
    %v277 = vld [vmem:[#allocation6 + $0x58] sm:$0xff]
    %v278 = vld [vmem:[#allocation6 + $0x60] sm:$0xff]
    %v279 = vld [vmem:[#allocation6 + $0x68] sm:$0xff]
    %v280 = vld [vmem:[#allocation6 + $0x70] sm:$0xff]
    %v281 = vld [vmem:[#allocation6 + $0x78] sm:$0xff]
    %v282 = vld [vmem:[#allocation6 + $0x80] sm:$0xff]
    %v283 = vld [vmem:[#allocation6 + $0x88] sm:$0xff]
    %v284 = vld [vmem:[#allocation6 + $0x90] sm:$0xff]
    %v285 = vld [vmem:[#allocation6 + $0x98] sm:$0xff]
    %v286 = vld [vmem:[#allocation6 + $0xa0] sm:$0xff]
    %v287 = vld [vmem:[#allocation6 + $0xa8] sm:$0xff]
    %v288 = vld [vmem:[#allocation6 + $0xb0] sm:$0xff]
    %v289 = vld [vmem:[#allocation6 + $0xb8] sm:$0xff]
    %v290 = vld [vmem:[#allocation6 + $0xc0] sm:$0xff]
    %v291 = vld [vmem:[#allocation6 + $0xc8] sm:$0xff]
    %v292 = vld [vmem:[#allocation6 + $0xd0] sm:$0xff]
    %v293 = vld [vmem:[#allocation6 + $0xd8] sm:$0xff]
    %v294 = vld [vmem:[#allocation6 + $0xe0] sm:$0xff]
    %v295 = vld [vmem:[#allocation6 + $0xe8] sm:$0xff]
    %v296 = vld [vmem:[#allocation6 + $0xf0] sm:$0xff]
    %v297 = vld [vmem:[#allocation6 + $0xf8] sm:$0xff]
    %v298 = vld [vmem:[%s4] sm:$0x3]
    %v300 = vlaneseq
    %v301 = vshrl.u32 %v300, 7
    %v302 = vsub.s32 0, %v301
    %v303 = vrot.slane %v298, %v302
    %v304 = vlaneseq
    %v305 = vshrl.u32 %v304, 7
    %v306 = vsub.s32 1, %v305
    %v307 = vrot.slane %v298, %v306
    %v342 = vunpack.c.l.b16 %v266
    %v343 = vunpack.c.h.b16 %v266
    %v344 = vunpack.c.l.b16 %v267
    %v345 = vunpack.c.h.b16 %v267
    %v346 = vunpack.c.l.b16 %v268
    %v347 = vunpack.c.h.b16 %v268
    %v348 = vunpack.c.l.b16 %v269
    %v349 = vunpack.c.h.b16 %v269
    %v350 = vunpack.c.l.b16 %v270
    %v351 = vunpack.c.h.b16 %v270
    %v352 = vunpack.c.l.b16 %v271
    %v353 = vunpack.c.h.b16 %v271
    %v354 = vunpack.c.l.b16 %v272
    %v355 = vunpack.c.h.b16 %v272
    %v356 = vunpack.c.l.b16 %v273
    %v357 = vunpack.c.h.b16 %v273
    %v358 = vunpack.c.l.b16 %v274
    %v359 = vunpack.c.h.b16 %v274
    %v360 = vunpack.c.l.b16 %v275
    %v361 = vunpack.c.h.b16 %v275
    %v362 = vunpack.c.l.b16 %v276
    %v363 = vunpack.c.h.b16 %v276
    %v364 = vunpack.c.l.b16 %v277
    %v365 = vunpack.c.h.b16 %v277
    %v366 = vunpack.c.l.b16 %v278
    %v367 = vunpack.c.h.b16 %v278
    %v368 = vunpack.c.l.b16 %v279
    %v369 = vunpack.c.h.b16 %v279
    %v370 = vunpack.c.l.b16 %v280
    %v371 = vunpack.c.h.b16 %v280
    %v372 = vunpack.c.l.b16 %v281
    %v373 = vunpack.c.h.b16 %v281
    %v374 = vunpack.c.l.b16 %v282
    %v375 = vunpack.c.h.b16 %v282
    %v376 = vunpack.c.l.b16 %v283
    %v377 = vunpack.c.h.b16 %v283
    %v378 = vunpack.c.l.b16 %v284
    %v379 = vunpack.c.h.b16 %v284
    %v380 = vunpack.c.l.b16 %v285
    %v381 = vunpack.c.h.b16 %v285
    %v382 = vunpack.c.l.b16 %v286
    %v383 = vunpack.c.h.b16 %v286
    %v384 = vunpack.c.l.b16 %v287
    %v385 = vunpack.c.h.b16 %v287
    %v386 = vunpack.c.l.b16 %v288
    %v387 = vunpack.c.h.b16 %v288
    %v388 = vunpack.c.l.b16 %v289
    %v389 = vunpack.c.h.b16 %v289
    %v390 = vunpack.c.l.b16 %v290
    %v391 = vunpack.c.h.b16 %v290
    %v392 = vunpack.c.l.b16 %v291
    %v393 = vunpack.c.h.b16 %v291
    %v394 = vunpack.c.l.b16 %v292
    %v395 = vunpack.c.h.b16 %v292
    %v396 = vunpack.c.l.b16 %v293
    %v397 = vunpack.c.h.b16 %v293
    %v398 = vunpack.c.l.b16 %v294
    %v399 = vunpack.c.h.b16 %v294
    %v400 = vunpack.c.l.b16 %v295
    %v401 = vunpack.c.h.b16 %v295
    %v402 = vunpack.c.l.b16 %v296
    %v403 = vunpack.c.h.b16 %v296
    %v404 = vunpack.c.l.b16 %v297
    %v405 = vunpack.c.h.b16 %v297
    %v406 = vpack.c.b16 %v344, %v342
    %v407 = vpack.c.b16 %v345, %v343
    %v408 = vpack.c.b16 %v348, %v346
    %v409 = vpack.c.b16 %v349, %v347
    %v410 = vpack.c.b16 %v352, %v350
    %v411 = vpack.c.b16 %v353, %v351
    %v412 = vpack.c.b16 %v356, %v354
    %v413 = vpack.c.b16 %v357, %v355
    %v414 = vpack.c.b16 %v360, %v358
    %v415 = vpack.c.b16 %v361, %v359
    %v416 = vpack.c.b16 %v364, %v362
    %v417 = vpack.c.b16 %v365, %v363
    %v418 = vpack.c.b16 %v368, %v366
    %v419 = vpack.c.b16 %v369, %v367
    %v420 = vpack.c.b16 %v372, %v370
    %v421 = vpack.c.b16 %v373, %v371
    %v422 = vpack.c.b16 %v376, %v374
    %v423 = vpack.c.b16 %v377, %v375
    %v424 = vpack.c.b16 %v380, %v378
    %v425 = vpack.c.b16 %v381, %v379
    %v426 = vpack.c.b16 %v384, %v382
    %v427 = vpack.c.b16 %v385, %v383
    %v428 = vpack.c.b16 %v388, %v386
    %v429 = vpack.c.b16 %v389, %v387
    %v430 = vpack.c.b16 %v392, %v390
    %v431 = vpack.c.b16 %v393, %v391
    %v432 = vpack.c.b16 %v396, %v394
    %v433 = vpack.c.b16 %v397, %v395
    %v434 = vpack.c.b16 %v400, %v398
    %v435 = vpack.c.b16 %v401, %v399
    %v436 = vpack.c.b16 %v404, %v402
    %v437 = vpack.c.b16 %v405, %v403
    %470 = vmatprep.subr.bf16.mxu0 %v407
    %471 = vmatpush1.bf16.msra.mxu0 %v406
    %472 = vmatprep.subr.bf16.mxu0 %v409
    %473 = vmatpush1.bf16.msra.mxu0 %v408
    %474 = vmatprep.subr.bf16.mxu0 %v411
    %475 = vmatpush1.bf16.msra.mxu0 %v410
    %476 = vmatprep.subr.bf16.mxu0 %v413
    %477 = vmatpush1.bf16.msra.mxu0 %v412
    %478 = vmatprep.subr.bf16.mxu0 %v415
    %479 = vmatpush1.bf16.msra.mxu0 %v414
    %480 = vmatprep.subr.bf16.mxu0 %v417
    %481 = vmatpush1.bf16.msra.mxu0 %v416
    %482 = vmatprep.subr.bf16.mxu0 %v419
    %483 = vmatpush1.bf16.msra.mxu0 %v418
    %484 = vmatprep.subr.bf16.mxu0 %v421
    %485 = vmatpush1.bf16.msra.mxu0 %v420
    %486 = vmatprep.subr.bf16.mxu0 %v423
    %487 = vmatpush1.bf16.msra.mxu0 %v422
    %488 = vmatprep.subr.bf16.mxu0 %v425
    %489 = vmatpush1.bf16.msra.mxu0 %v424
    %490 = vmatprep.subr.bf16.mxu0 %v427
    %491 = vmatpush1.bf16.msra.mxu0 %v426
    %492 = vmatprep.subr.bf16.mxu0 %v429
    %493 = vmatpush1.bf16.msra.mxu0 %v428
    %494 = vmatprep.subr.bf16.mxu0 %v431
    %495 = vmatpush1.bf16.msra.mxu0 %v430
    %496 = vmatprep.subr.bf16.mxu0 %v433
    %497 = vmatpush1.bf16.msra.mxu0 %v432
    %498 = vmatprep.subr.bf16.mxu0 %v435
    %499 = vmatpush1.bf16.msra.mxu0 %v434
    %500 = vmatprep.subr.bf16.mxu0 %v437
    %501 = vmatpush1.bf16.msra.mxu0 %v436
    %502 = vmatprep.mubr.bf16.mxu0 %v263
    %503 = vmatmul.mubr.bf16.gmra.mrb[0].mxu0 %v262
    %v504 = vpop.f32.mrb[0].mxu0
    %v505 = vadd.f32 %v303, %v504
    %v506 = vpop.f32.mrb[0].mxu0
    %v507 = vadd.f32 %v307, %v506
    %v508 = vpop.f32.mrb[0].mxu0
    %v509 = vadd.f32 %v303, %v508
    %v510 = vpop.f32.mrb[0].mxu0
    %v511 = vadd.f32 %v307, %v510
    %512 = vdwg.mxu0
    %v513 = vmax.f32 %v505, 0.0
    %v514 = vmax.f32 %v507, 0.0
    %v515 = vmax.f32 %v509, 0.0
    %v516 = vmax.f32 %v511, 0.0
    %v517 = vld [vmem:[#allocation7] sm:$0xff]
    %v518 = vld [vmem:[#allocation7 + $0x8] sm:$0xff]
    %v519 = vld [vmem:[#allocation7 + $0x10] sm:$0xff]
    %v520 = vld [vmem:[#allocation7 + $0x18] sm:$0xff]
    %v521 = vld [vmem:[#allocation7 + $0x20] sm:$0xff]
    %v522 = vld [vmem:[#allocation7 + $0x28] sm:$0xff]
    %v523 = vld [vmem:[#allocation7 + $0x30] sm:$0xff]
    %v524 = vld [vmem:[#allocation7 + $0x38] sm:$0xff]
    %v525 = vld [vmem:[#allocation7 + $0x40] sm:$0xff]
    %v526 = vld [vmem:[#allocation7 + $0x48] sm:$0xff]
    %v527 = vld [vmem:[#allocation7 + $0x50] sm:$0xff]
    %v528 = vld [vmem:[#allocation7 + $0x58] sm:$0xff]
    %v529 = vld [vmem:[#allocation7 + $0x60] sm:$0xff]
    %v530 = vld [vmem:[#allocation7 + $0x68] sm:$0xff]
    %v531 = vld [vmem:[#allocation7 + $0x70] sm:$0xff]
    %v532 = vld [vmem:[#allocation7 + $0x78] sm:$0xff]
    %v533 = vld [vmem:[#allocation7 + $0x80] sm:$0xff]
    %v534 = vld [vmem:[#allocation7 + $0x88] sm:$0xff]
    %v535 = vld [vmem:[#allocation7 + $0x90] sm:$0xff]
    %v536 = vld [vmem:[#allocation7 + $0x98] sm:$0xff]
    %v537 = vld [vmem:[#allocation7 + $0xa0] sm:$0xff]
    %v538 = vld [vmem:[#allocation7 + $0xa8] sm:$0xff]
    %v539 = vld [vmem:[#allocation7 + $0xb0] sm:$0xff]
    %v540 = vld [vmem:[#allocation7 + $0xb8] sm:$0xff]
    %v541 = vld [vmem:[#allocation7 + $0xc0] sm:$0xff]
    %v542 = vld [vmem:[#allocation7 + $0xc8] sm:$0xff]
    %v543 = vld [vmem:[#allocation7 + $0xd0] sm:$0xff]
    %v544 = vld [vmem:[#allocation7 + $0xd8] sm:$0xff]
    %v545 = vld [vmem:[#allocation7 + $0xe0] sm:$0xff]
    %v546 = vld [vmem:[#allocation7 + $0xe8] sm:$0xff]
    %v547 = vld [vmem:[#allocation7 + $0xf0] sm:$0xff]
    %v548 = vld [vmem:[#allocation7 + $0xf8] sm:$0xff]
    %v549 = vld [vmem:[%s6] sm:$0x3]
    %v551 = vlaneseq
    %v552 = vshrl.u32 %v551, 7
    %v553 = vsub.s32 0, %v552
    %v554 = vrot.slane %v549, %v553
    %v555 = vlaneseq
    %v556 = vshrl.u32 %v555, 7
    %v557 = vsub.s32 1, %v556
    %v558 = vrot.slane %v549, %v557
    %v593 = vunpack.c.l.b16 %v517
    %v594 = vunpack.c.h.b16 %v517
    %v595 = vunpack.c.l.b16 %v518
    %v596 = vunpack.c.h.b16 %v518
    %v597 = vunpack.c.l.b16 %v519
    %v598 = vunpack.c.h.b16 %v519
    %v599 = vunpack.c.l.b16 %v520
    %v600 = vunpack.c.h.b16 %v520
    %v601 = vunpack.c.l.b16 %v521
    %v602 = vunpack.c.h.b16 %v521
    %v603 = vunpack.c.l.b16 %v522
    %v604 = vunpack.c.h.b16 %v522
    %v605 = vunpack.c.l.b16 %v523
    %v606 = vunpack.c.h.b16 %v523
    %v607 = vunpack.c.l.b16 %v524
    %v608 = vunpack.c.h.b16 %v524
    %v609 = vunpack.c.l.b16 %v525
    %v610 = vunpack.c.h.b16 %v525
    %v611 = vunpack.c.l.b16 %v526
    %v612 = vunpack.c.h.b16 %v526
    %v613 = vunpack.c.l.b16 %v527
    %v614 = vunpack.c.h.b16 %v527
    %v615 = vunpack.c.l.b16 %v528
    %v616 = vunpack.c.h.b16 %v528
    %v617 = vunpack.c.l.b16 %v529
    %v618 = vunpack.c.h.b16 %v529
    %v619 = vunpack.c.l.b16 %v530
    %v620 = vunpack.c.h.b16 %v530
    %v621 = vunpack.c.l.b16 %v531
    %v622 = vunpack.c.h.b16 %v531
    %v623 = vunpack.c.l.b16 %v532
    %v624 = vunpack.c.h.b16 %v532
    %v625 = vunpack.c.l.b16 %v533
    %v626 = vunpack.c.h.b16 %v533
    %v627 = vunpack.c.l.b16 %v534
    %v628 = vunpack.c.h.b16 %v534
    %v629 = vunpack.c.l.b16 %v535
    %v630 = vunpack.c.h.b16 %v535
    %v631 = vunpack.c.l.b16 %v536
    %v632 = vunpack.c.h.b16 %v536
    %v633 = vunpack.c.l.b16 %v537
    %v634 = vunpack.c.h.b16 %v537
    %v635 = vunpack.c.l.b16 %v538
    %v636 = vunpack.c.h.b16 %v538
    %v637 = vunpack.c.l.b16 %v539
    %v638 = vunpack.c.h.b16 %v539
    %v639 = vunpack.c.l.b16 %v540
    %v640 = vunpack.c.h.b16 %v540
    %v641 = vunpack.c.l.b16 %v541
    %v642 = vunpack.c.h.b16 %v541
    %v643 = vunpack.c.l.b16 %v542
    %v644 = vunpack.c.h.b16 %v542
    %v645 = vunpack.c.l.b16 %v543
    %v646 = vunpack.c.h.b16 %v543
    %v647 = vunpack.c.l.b16 %v544
    %v648 = vunpack.c.h.b16 %v544
    %v649 = vunpack.c.l.b16 %v545
    %v650 = vunpack.c.h.b16 %v545
    %v651 = vunpack.c.l.b16 %v546
    %v652 = vunpack.c.h.b16 %v546
    %v653 = vunpack.c.l.b16 %v547
    %v654 = vunpack.c.h.b16 %v547
    %v655 = vunpack.c.l.b16 %v548
    %v656 = vunpack.c.h.b16 %v548
    %v657 = vpack.c.b16 %v595, %v593
    %v658 = vpack.c.b16 %v596, %v594
    %v659 = vpack.c.b16 %v599, %v597
    %v660 = vpack.c.b16 %v600, %v598
    %v661 = vpack.c.b16 %v603, %v601
    %v662 = vpack.c.b16 %v604, %v602
    %v663 = vpack.c.b16 %v607, %v605
    %v664 = vpack.c.b16 %v608, %v606
    %v665 = vpack.c.b16 %v611, %v609
    %v666 = vpack.c.b16 %v612, %v610
    %v667 = vpack.c.b16 %v615, %v613
    %v668 = vpack.c.b16 %v616, %v614
    %v669 = vpack.c.b16 %v619, %v617
    %v670 = vpack.c.b16 %v620, %v618
    %v671 = vpack.c.b16 %v623, %v621
    %v672 = vpack.c.b16 %v624, %v622
    %v673 = vpack.c.b16 %v627, %v625
    %v674 = vpack.c.b16 %v628, %v626
    %v675 = vpack.c.b16 %v631, %v629
    %v676 = vpack.c.b16 %v632, %v630
    %v677 = vpack.c.b16 %v635, %v633
    %v678 = vpack.c.b16 %v636, %v634
    %v679 = vpack.c.b16 %v639, %v637
    %v680 = vpack.c.b16 %v640, %v638
    %v681 = vpack.c.b16 %v643, %v641
    %v682 = vpack.c.b16 %v644, %v642
    %v683 = vpack.c.b16 %v647, %v645
    %v684 = vpack.c.b16 %v648, %v646
    %v685 = vpack.c.b16 %v651, %v649
    %v686 = vpack.c.b16 %v652, %v650
    %v687 = vpack.c.b16 %v655, %v653
    %v688 = vpack.c.b16 %v656, %v654
    %721 = vmatprep.subr.bf16.mxu0 %v658
    %722 = vmatpush1.bf16.msra.mxu0 %v657
    %723 = vmatprep.subr.bf16.mxu0 %v660
    %724 = vmatpush1.bf16.msra.mxu0 %v659
    %725 = vmatprep.subr.bf16.mxu0 %v662
    %726 = vmatpush1.bf16.msra.mxu0 %v661
    %727 = vmatprep.subr.bf16.mxu0 %v664
    %728 = vmatpush1.bf16.msra.mxu0 %v663
    %729 = vmatprep.subr.bf16.mxu0 %v666
    %730 = vmatpush1.bf16.msra.mxu0 %v665
    %731 = vmatprep.subr.bf16.mxu0 %v668
    %732 = vmatpush1.bf16.msra.mxu0 %v667
    %733 = vmatprep.subr.bf16.mxu0 %v670
    %734 = vmatpush1.bf16.msra.mxu0 %v669
    %735 = vmatprep.subr.bf16.mxu0 %v672
    %736 = vmatpush1.bf16.msra.mxu0 %v671
    %737 = vmatprep.subr.bf16.mxu0 %v674
    %738 = vmatpush1.bf16.msra.mxu0 %v673
    %739 = vmatprep.subr.bf16.mxu0 %v676
    %740 = vmatpush1.bf16.msra.mxu0 %v675
    %741 = vmatprep.subr.bf16.mxu0 %v678
    %742 = vmatpush1.bf16.msra.mxu0 %v677
    %743 = vmatprep.subr.bf16.mxu0 %v680
    %744 = vmatpush1.bf16.msra.mxu0 %v679
    %745 = vmatprep.subr.bf16.mxu0 %v682
    %746 = vmatpush1.bf16.msra.mxu0 %v681
    %747 = vmatprep.subr.bf16.mxu0 %v684
    %748 = vmatpush1.bf16.msra.mxu0 %v683
    %749 = vmatprep.subr.bf16.mxu0 %v686
    %750 = vmatpush1.bf16.msra.mxu0 %v685
    %751 = vmatprep.subr.bf16.mxu0 %v688
    %752 = vmatpush1.bf16.msra.mxu0 %v687
    %753 = vmatprep.mubr.bf16.mxu0 %v265
    %754 = vmatmul.mubr.bf16.gmra.mrb[0].mxu0 %v264
    %v755 = vpop.f32.mrb[0].mxu0
    %v756 = vadd.f32 %v554, %v755
    %v757 = vpop.f32.mrb[0].mxu0
    %v758 = vadd.f32 %v558, %v757
    %v759 = vpop.f32.mrb[0].mxu0
    %v760 = vadd.f32 %v554, %v759
    %v761 = vpop.f32.mrb[0].mxu0
    %v762 = vadd.f32 %v558, %v761
    %763 = vdwg.mxu0
    %v764 = vmax.f32 %v756, 0.0
    %v765 = vmax.f32 %v758, 0.0
    %v766 = vmax.f32 %v760, 0.0
    %v767 = vmax.f32 %v762, 0.0
    %v768 = vld [vmem:[%s7] sm:$0x3]
    %v770 = vlaneseq
    %v771 = vshrl.u32 %v770, 7
    %v772 = vsub.s32 0, %v771
    %v773 = vrot.slane %v768, %v772
    %v774 = vlaneseq
    %v775 = vshrl.u32 %v774, 7
    %v776 = vsub.s32 1, %v775
    %v777 = vrot.slane %v768, %v776
    %v780 = vmul.f32 %v513, %v773
    %v781 = vmul.f32 %v514, %v777
    %v782 = vmul.f32 %v515, %v773
    %v783 = vmul.f32 %v516, %v777
    %v784 = vadd.f32 %v780, %v781
    %785 = vadd.xlane.f32.xlu0 %v784
    %v786 = vpop.xlane.xlu0 %785
    %v787 = vadd.f32 %v782, %v783
    %788 = vadd.xlane.f32.xlu0 %v787
    %v789 = vpop.xlane.xlu0 %788
    %v790 = vld [vmem:[%s8] sm:$0x3]
    %v792 = vlaneseq
    %v793 = vshrl.u32 %v792, 7
    %v794 = vsub.s32 0, %v793
    %v795 = vrot.slane %v790, %v794
    %v796 = vlaneseq
    %v797 = vshrl.u32 %v796, 7
    %v798 = vsub.s32 1, %v797
    %v799 = vrot.slane %v790, %v798
    %v802 = vmul.f32 %v764, %v795
    %v803 = vmul.f32 %v765, %v799
    %v804 = vmul.f32 %v766, %v795
    %v805 = vmul.f32 %v767, %v799
    %v806 = vadd.f32 %v802, %v803
    %807 = vadd.xlane.f32.xlu0 %v806
    %v808 = vpop.xlane.xlu0 %807
    %v809 = vadd.f32 %v804, %v805
    %810 = vadd.xlane.f32.xlu0 %v809
    %v811 = vpop.xlane.xlu0 %810
    %v812 = vld [vmem:[%s9] sm:$0x1]
    %v814 = vlaneseq
    %v815 = vshrl.u32 %v814, 7
    %v816 = vsub.s32 0, %v815
    %v817 = vrot.slane %v812, %v816
    %v819 = vadd.f32 %v786, %v817
    %v820 = vadd.f32 %v789, %v817
    %vm821 = vcmask 7168
    %822 = vst.msk [vmem:[%s10] sm:$0xff] %vm821, %v819
    %823 = vst.msk [vmem:[%s10 + $0x8] sm:$0xff] %vm821, %v820
    %v824 = vadd.f32 %v808, %v817
    %v825 = vadd.f32 %v811, %v817
    %vm826 = vcmask 15368
    %827 = vst.msk [vmem:[%s10] sm:$0xff] %vm826, %v824
    %828 = vst.msk [vmem:[%s10 + $0x8] sm:$0xff] %vm826, %v825
    // Predicated region
    $region58: #{tpu_custom_call.1} parent=1 // pred_check
      _
    $region59: #{tpu_custom_call.1} parent=1 // pred_check_branch
      %830 = sbr.rel (0) target = $region61
    $region60: #{tpu_custom_call.1} parent=1 // pred_region
      _
    $region61: #{tpu_custom_call.1} parent=1 // pred_fallthru
      _
    // Predicated region
    $region62: #{tpu_custom_call.1} parent=1 // pred_check
      _
    $region63: #{tpu_custom_call.1} parent=1 // pred_check_branch
      %832 = sbr.rel (0) target = $region65
    $region64: #{tpu_custom_call.1} parent=1 // pred_region
      _
    $region65: #{tpu_custom_call.1} parent=1 // pred_fallthru
      _
    %833 = vsyncpa [#allocation3], 1
    %834 = vsyncpa [#allocation5], 1
    %835 = vsyncpa [#allocation8], 1

</llo_original>
